<compile_context>
chip_gen: v5e
topology: v5e:2x2
jax: 0.10.0
libtpu: 0.0.40
codegen_flags: <defaults>
</compile_context>

<pallas_src>
import functools
import math

import jax
import jax.numpy as jnp
from jax.experimental import pallas as pl
from jax.experimental.pallas import tpu as pltpu

_BN_EPS = 1e-5
_LN_EPS = 1e-5


def _round_up(x, m):
    return (x + m - 1) // m * m


# ----------------------------------------------------------------------------
# K1: h = tanh((x * bn_scale + bn_shift) @ Win + bin)
# ----------------------------------------------------------------------------
def _in_conv_kernel(x_ref, scale_ref, shift_ref, w_ref, b_ref, o_ref):
    xn = x_ref[...] * scale_ref[...] + shift_ref[...]          # (TM, Fin)
    y = jnp.dot(xn, w_ref[...], preferred_element_type=jnp.float32) + b_ref[...]
    o_ref[...] = jnp.tanh(y)


# ----------------------------------------------------------------------------
# K2: out = adj @ x, K-blocked; adj tile is bf16, x tile cast to bf16, f32 acc.
#     Output block is revisited across the (arbitrary) K axis -> accumulator.
# ----------------------------------------------------------------------------
def _spmm_kernel(adj_ref, x_ref, o_ref):
    @pl.when(pl.program_id(1) == 0)
    def _():
        o_ref[...] = jnp.zeros_like(o_ref)

    o_ref[...] += jnp.dot(adj_ref[...],                        # (TM, TK) bf16
                          x_ref[...].astype(jnp.bfloat16),     # (TK, F)  bf16
                          preferred_element_type=jnp.float32)


# ----------------------------------------------------------------------------
# K3: y = x @ W + b ; y = LayerNorm(y) ; y = tanh(y)
# ----------------------------------------------------------------------------
def _lin_ln_tanh_kernel(x_ref, w_ref, b_ref, g_ref, beta_ref, o_ref):
    y = jnp.dot(x_ref[...], w_ref[...],
                preferred_element_type=jnp.float32) + b_ref[...]
    mu = jnp.mean(y, axis=-1, keepdims=True)
    var = jnp.mean(jnp.square(y - mu), axis=-1, keepdims=True)
    yn = (y - mu) * jax.lax.rsqrt(var + _LN_EPS)
    o_ref[...] = jnp.tanh(yn * g_ref[...] + beta_ref[...])


# ----------------------------------------------------------------------------
# K4: y = x @ W + b ; LayerNorm ; tanh ; out = y @ Wout + bout
# ----------------------------------------------------------------------------
def _lin_ln_tanh_out_kernel(x_ref, w_ref, b_ref, g_ref, beta_ref,
                            wo_ref, bo_ref, o_ref):
    y = jnp.dot(x_ref[...], w_ref[...],
                preferred_element_type=jnp.float32) + b_ref[...]
    mu = jnp.mean(y, axis=-1, keepdims=True)
    var = jnp.mean(jnp.square(y - mu), axis=-1, keepdims=True)
    h = jnp.tanh((y - mu) * jax.lax.rsqrt(var + _LN_EPS) * g_ref[...]
                 + beta_ref[...])
    o_ref[...] = jnp.dot(h, wo_ref[...],
                         preferred_element_type=jnp.float32) + bo_ref[...]


# ----------------------------------------------------------------------------
# pallas_call wrappers
# ----------------------------------------------------------------------------
def _call_rowwise(kernel, x, param_arrays, f_out, row_tile):
    """Row-tiled call: x is (Np, Fin); param_arrays are small, fully resident."""
    n, f_in = x.shape
    in_specs = [pl.BlockSpec((row_tile, f_in), lambda i: (i, 0))]
    for p_arr in param_arrays:
        in_specs.append(pl.BlockSpec(p_arr.shape, lambda i: (0, 0)))
    return pl.pallas_call(
        kernel,
        out_shape=jax.ShapeDtypeStruct((n, f_out), jnp.float32),
        grid_spec=pltpu.PrefetchScalarGridSpec(
            num_scalar_prefetch=0,
            grid=(n // row_tile,),
            in_specs=in_specs,
            out_specs=pl.BlockSpec((row_tile, f_out), lambda i: (i, 0)),
        ),
        compiler_params=pltpu.CompilerParams(
            dimension_semantics=("parallel",)),
    )(x, *param_arrays)


def _spmm(adj_bf16, x, tm, tk):
    n, f = x.shape
    return pl.pallas_call(
        _spmm_kernel,
        out_shape=jax.ShapeDtypeStruct((n, f), jnp.float32),
        grid_spec=pltpu.PrefetchScalarGridSpec(
            num_scalar_prefetch=0,
            grid=(n // tm, n // tk),
            in_specs=[
                pl.BlockSpec((tm, tk), lambda i, k: (i, k)),   # adj tile (bf16)
                pl.BlockSpec((tk, f), lambda i, k: (k, 0)),    # feature slab
            ],
            out_specs=pl.BlockSpec((tm, f), lambda i, k: (i, 0)),
        ),
        compiler_params=pltpu.CompilerParams(
            dimension_semantics=("parallel", "arbitrary")),
    )(adj_bf16, x)


def sgcn_forward(x, adj, params, *, row_tile=512, spmm_tm=256, spmm_tk=256,
                 k_hops=4):
    """x: (N, input_dim) f32, adj: (N, N) f32 dense (row-normalized, >=0).
    Weights are stored pre-transposed as (in, out); biases / norm params (1, d)."""
    n, _ = x.shape

    # BatchNorm1d, training-mode batch statistics over the real N rows.
    # (Tiny (1, Fin) reduction done in the wrapper; the per-element normalize is
    #  fused into K1 as an affine scale/shift.)
    mean = jnp.mean(x, axis=0, keepdims=True)
    var = jnp.mean(jnp.square(x - mean), axis=0, keepdims=True)
    bn_scale = params["bn_gamma"] * jax.lax.rsqrt(var + _BN_EPS)
    bn_shift = params["bn_beta"] - mean * bn_scale

    # Pad N to a common multiple of all row tiles (pad rows/cols are zero and
    # never mix into real rows because their adjacency entries are zero).
    pad_to = math.lcm(row_tile, spmm_tm, spmm_tk)
    n_pad = _round_up(n, pad_to)
    x_p = jnp.pad(x, ((0, n_pad - n), (0, 0)))
    # Store the dense adjacency as bf16 in HBM: it is the dominant HBM stream.
    adj_p = jnp.pad(adj, ((0, n_pad - n), (0, n_pad - n))).astype(jnp.bfloat16)

    # Stage 1: BN affine -> in_conv -> tanh               (Np, Fin) -> (Np, 140)
    h = _call_rowwise(_in_conv_kernel, x_p,
                      [bn_scale, bn_shift, params["w_in"], params["b_in"]],
                      params["w_in"].shape[1], row_tile)

    # Stage 2: sglayer-1 hop aggregation (adj^4 @ h) on 140 features
    for _ in range(k_hops):
        h = _spmm(adj_p, h, spmm_tm, spmm_tk)

    # Stage 3: fc(140->120) -> LayerNorm(120) -> tanh
    h = _call_rowwise(_lin_ln_tanh_kernel, h,
                      [params["w1"], params["b1"],
                       params["ln1_g"], params["ln1_b"]],
                      params["w1"].shape[1], row_tile)

    # Stage 4: sglayer-2 hop aggregation on 120 features
    for _ in range(k_hops):
        h = _spmm(adj_p, h, spmm_tm, spmm_tk)

    # Stage 5: fc(120->100) -> LayerNorm(100) -> tanh -> out_conv(100->out)
    out = _call_rowwise(_lin_ln_tanh_out_kernel, h,
                        [params["w2"], params["b2"],
                         params["ln2_g"], params["ln2_b"],
                         params["w_out"], params["b_out"]],
                        params["w_out"].shape[1], row_tile)
    return out[:n]


# ----------------------------------------------------------------------------
# Pure-JAX f32 reference (mirrors the PyTorch module ordering exactly)
# ----------------------------------------------------------------------------
def _reference(x, adj, params, k_hops=4):
    mean = jnp.mean(x, axis=0, keepdims=True)
    var = jnp.mean(jnp.square(x - mean), axis=0, keepdims=True)
    h = (x - mean) * jax.lax.rsqrt(var + _BN_EPS) * params["bn_gamma"] \
        + params["bn_beta"]
    h = jnp.tanh(h @ params["w_in"] + params["b_in"])

    def sg_block(h, w, b, g, be):
        for _ in range(k_hops):
            h = adj @ h
        y = h @ w + b
        mu = jnp.mean(y, axis=-1, keepdims=True)
        v = jnp.mean(jnp.square(y - mu), axis=-1, keepdims=True)
        return jnp.tanh((y - mu) * jax.lax.rsqrt(v + _LN_EPS) * g + be)

    h = sg_block(h, params["w1"], params["b1"], params["ln1_g"], params["ln1_b"])
    h = sg_block(h, params["w2"], params["b2"], params["ln2_g"], params["ln2_b"])
    return h @ params["w_out"] + params["b_out"]


if __name__ == "__main__":
    N, F_IN, F_OUT = 200, 32, 16
    key = jax.random.PRNGKey(0)
    kx, ka, k0, k1, k2, k3, k4, k5, k6, k7 = jax.random.split(key, 10)

    x = jax.random.normal(kx, (N, F_IN), dtype=jnp.float32)

    # Non-negative row-stochastic adjacency with strong self loops (dense
    # stand-in for the sparse torch.spmm adjacency).
    adj_raw = jnp.maximum(jax.random.uniform(ka, (N, N)) - 0.95, 0.0)
    adj_raw = adj_raw / jnp.maximum(jnp.sum(adj_raw, axis=1, keepdims=True), 1e-6)
    adj = 0.6 * jnp.eye(N, dtype=jnp.float32) + 0.4 * adj_raw

    def linear_init(kw, kb, fan_in, fan_out):
        bound = 1.0 / math.sqrt(fan_in)
        w = jax.random.uniform(kw, (fan_in, fan_out), minval=-bound,
                               maxval=bound, dtype=jnp.float32)
        b = jax.random.uniform(kb, (1, fan_out), minval=-bound,
                               maxval=bound, dtype=jnp.float32)
        return w, b

    w_in, b_in = linear_init(k0, k1, F_IN, 140)     # in_conv
    w1, b1 = linear_init(k2, k3, 140, 120)          # sglayer(140,120).lin
    w2, b2 = linear_init(k4, k5, 120, 100)          # sglayer(120,100).lin
    w_out, b_out = linear_init(k6, k7, 100, F_OUT)  # out_conv

    params = dict(
        bn_gamma=jnp.ones((1, F_IN), jnp.float32),
        bn_beta=jnp.zeros((1, F_IN), jnp.float32),
        w_in=w_in, b_in=b_in,
        w1=w1, b1=b1,
        ln1_g=jnp.ones((1, 120), jnp.float32),
        ln1_b=jnp.zeros((1, 120), jnp.float32),
        w2=w2, b2=b2,
        ln2_g=jnp.ones((1, 100), jnp.float32),
        ln2_b=jnp.zeros((1, 100), jnp.float32),
        w_out=w_out, b_out=b_out,
    )

    out = sgcn_forward(x, adj, params)
    out = jax.block_until_ready(out)

    ref = _reference(x, adj, params)
    assert out.shape == (N, F_OUT)
    assert bool(jnp.all(jnp.isfinite(out)))
    # The kernel intentionally stores the adjacency (and the spmm operands) in
    # bf16 with f32 accumulation; the reference is pure f32, so allow a small
    # mixed-precision gap (measured ~1e-2 relative).
    rel_err = float(jnp.linalg.norm(out - ref) / jnp.linalg.norm(ref))
    assert rel_err < 5e-2, f"relative error vs f32 reference too large: {rel_err}"

    print("KERNEL_OK")
</pallas_src>

<mosaic_0001>
module attributes {stable_mosaic.version = 11 : i64} {
  func.func @_in_conv_kernel(%arg0: i32, %arg1: memref<512x32xf32, #tpu.memory_space<vmem>>, %arg2: memref<1x32xf32, #tpu.memory_space<vmem>>, %arg3: memref<1x32xf32, #tpu.memory_space<vmem>>, %arg4: memref<32x140xf32, #tpu.memory_space<vmem>>, %arg5: memref<1x140xf32, #tpu.memory_space<vmem>>, %arg6: memref<512x140xf32, #tpu.memory_space<vmem>>) attributes {dimension_semantics = [#tpu.dimension_semantics<parallel>], iteration_bounds = array<i64: 1>, scalar_prefetch = 0 : i64, scratch_operands = 0 : i64, tpu.core_type = #tpu.core_type<tc>, window_params = [{transform_indices = @transform_0, window_bounds = array<i64: 512, 32>}, {pipeline_mode = #tpu.pipeline_mode<synchronous>, transform_indices = @transform_1, window_bounds = array<i64: 1, 32>}, {pipeline_mode = #tpu.pipeline_mode<synchronous>, transform_indices = @transform_2, window_bounds = array<i64: 1, 32>}, {pipeline_mode = #tpu.pipeline_mode<synchronous>, transform_indices = @transform_3, window_bounds = array<i64: 32, 140>}, {pipeline_mode = #tpu.pipeline_mode<synchronous>, transform_indices = @transform_4, window_bounds = array<i64: 1, 140>}, {transform_indices = @transform_5, window_bounds = array<i64: 512, 140>}]} {
    %c0 = arith.constant 0 : index
    %c0_0 = arith.constant 0 : index
    %0 = vector.load %arg1[%c0, %c0_0] : memref<512x32xf32, #tpu.memory_space<vmem>>, vector<512x32xf32>
    %c0_1 = arith.constant 0 : index
    %c0_2 = arith.constant 0 : index
    %1 = vector.load %arg2[%c0_1, %c0_2] : memref<1x32xf32, #tpu.memory_space<vmem>>, vector<1x32xf32>
    %2 = vector.broadcast %1 : vector<1x32xf32> to vector<512x32xf32>
    %3 = arith.mulf %0, %2 : vector<512x32xf32>
    %c0_3 = arith.constant 0 : index
    %c0_4 = arith.constant 0 : index
    %4 = vector.load %arg3[%c0_3, %c0_4] : memref<1x32xf32, #tpu.memory_space<vmem>>, vector<1x32xf32>
    %5 = vector.broadcast %4 : vector<1x32xf32> to vector<512x32xf32>
    %6 = arith.addf %3, %5 : vector<512x32xf32>
    %c0_5 = arith.constant 0 : index
    %c0_6 = arith.constant 0 : index
    %7 = vector.load %arg4[%c0_5, %c0_6] : memref<32x140xf32, #tpu.memory_space<vmem>>, vector<32x140xf32>
    %cst = arith.constant dense<0.000000e+00> : vector<512x140xf32>
    %8 = tpu.matmul %6, %7, %cst {dimension_numbers = #tpu.dot_dimension_numbers<[1], [0], [0], [1], [0, 0, 1, 1], [], []>} : vector<512x32xf32>, vector<32x140xf32>, vector<512x140xf32> -> vector<512x140xf32>
    %c0_7 = arith.constant 0 : index
    %c0_8 = arith.constant 0 : index
    %9 = vector.load %arg5[%c0_7, %c0_8] : memref<1x140xf32, #tpu.memory_space<vmem>>, vector<1x140xf32>
    %10 = vector.broadcast %9 : vector<1x140xf32> to vector<512x140xf32>
    %11 = arith.addf %8, %10 : vector<512x140xf32>
    %12 = math.tanh %11 : vector<512x140xf32>
    %c0_9 = arith.constant 0 : index
    %c0_10 = arith.constant 0 : index
    %13 = vector.load %arg6[%c0_9, %c0_10] : memref<512x140xf32, #tpu.memory_space<vmem>>, vector<512x140xf32>
    tpu.vector_store %arg6[%c0_9, %c0_10], %12 {strides = array<i32>} : memref<512x140xf32, #tpu.memory_space<vmem>>, vector<512x140xf32>,
    return
  }
  func.func @transform_0(%arg0: i32) -> (i32, i32) {
    %c0_i32 = arith.constant 0 : i32
    %c0_i32_0 = arith.constant 0 : i32
    return %arg0, %c0_i32 : i32, i32
  }
  func.func @transform_1(%arg0: i32) -> (i32, i32) {
    %c0_i32 = arith.constant 0 : i32
    %c0_i32_0 = arith.constant 0 : i32
    %c0_i32_1 = arith.constant 0 : i32
    return %c0_i32, %c0_i32_0 : i32, i32
  }
  func.func @transform_2(%arg0: i32) -> (i32, i32) {
    %c0_i32 = arith.constant 0 : i32
    %c0_i32_0 = arith.constant 0 : i32
    %c0_i32_1 = arith.constant 0 : i32
    return %c0_i32, %c0_i32_0 : i32, i32
  }
  func.func @transform_3(%arg0: i32) -> (i32, i32) {
    %c0_i32 = arith.constant 0 : i32
    %c0_i32_0 = arith.constant 0 : i32
    %c0_i32_1 = arith.constant 0 : i32
    return %c0_i32, %c0_i32_0 : i32, i32
  }
  func.func @transform_4(%arg0: i32) -> (i32, i32) {
    %c0_i32 = arith.constant 0 : i32
    %c0_i32_0 = arith.constant 0 : i32
    %c0_i32_1 = arith.constant 0 : i32
    return %c0_i32, %c0_i32_0 : i32, i32
  }
  func.func @transform_5(%arg0: i32) -> (i32, i32) {
    %c0_i32 = arith.constant 0 : i32
    %c0_i32_0 = arith.constant 0 : i32
    return %arg0, %c0_i32 : i32, i32
  }
}

</mosaic_0001>

<llo_original>
// kernel: tpu_custom_call.1
$region0: #{tpu_custom_call.1}
  #allocation0 [shape = 'u32[]', space=smem, size = 0x4, offset = 0x4, fixed_abs, tag = 'smem constant byte address 0x4 - core index']
  #allocation1 [shape = 'u32[72,128]{1,0:T(1,128)}', space=vmem, size = 0x9000, scoped, tag = 'internal scratch']
  %s0 = inlined_call_operand.vmem [shape: f32[512,32], index: 0, kind: input, shape index: {}]
  %s1 = inlined_call_operand.vmem [shape: f32[1,32], index: 1, kind: input, shape index: {}]
  %s2 = inlined_call_operand.vmem [shape: f32[1,32], index: 2, kind: input, shape index: {}]
  %s3 = inlined_call_operand.vmem [shape: f32[32,140], index: 3, kind: input, shape index: {}]
  %s4 = inlined_call_operand.vmem [shape: f32[1,140], index: 4, kind: input, shape index: {}]
  %s5 = inlined_call_operand.vmem [shape: f32[512,140], index: 5, kind: output, shape index: {}]
  %s6 = sld [smem:[#allocation0]]
  $region30: #{tpu_custom_call.1} parent=0
    _
  %s8 = ssub.s32 1, %s6
  %s9 = scalar_select 0, %s8, %s6
  // Predicated region
  $region2: #{tpu_custom_call.1} parent=0 // pred_check
    _
  $region3: #{tpu_custom_call.1} parent=0 // pred_check_branch
    %11 = sbr.rel (0) target = $region5
  $region4: #{tpu_custom_call.1} parent=0 // pred_region
    _
  $region5: #{tpu_custom_call.1} parent=0 // pred_fallthru
    _
  // Predicated region
  $region6: #{tpu_custom_call.1} parent=0 // pred_check
    _
  $region7: #{tpu_custom_call.1} parent=0 // pred_check_branch
    %13 = sbr.rel (0) target = $region9
  $region8: #{tpu_custom_call.1} parent=0 // pred_region
    _
  $region9: #{tpu_custom_call.1} parent=0 // pred_fallthru
    _
  // Predicated region
  $region10: #{tpu_custom_call.1} parent=0 // pred_check
    _
  $region11: #{tpu_custom_call.1} parent=0 // pred_check_branch
    %15 = sbr.rel (0) target = $region13
  $region12: #{tpu_custom_call.1} parent=0 // pred_region
    _
  $region13: #{tpu_custom_call.1} parent=0 // pred_fallthru
    _
  // Predicated region
  $region14: #{tpu_custom_call.1} parent=0 // pred_check
    _
  $region15: #{tpu_custom_call.1} parent=0 // pred_check_branch
    %17 = sbr.rel (0) target = $region17
  $region16: #{tpu_custom_call.1} parent=0 // pred_region
    _
  $region17: #{tpu_custom_call.1} parent=0 // pred_fallthru
    _
  // Predicated region
  $region18: #{tpu_custom_call.1} parent=0 // pred_check
    _
  $region19: #{tpu_custom_call.1} parent=0 // pred_check_branch
    %19 = sbr.rel (0) target = $region21
  $region20: #{tpu_custom_call.1} parent=0 // pred_region
    _
  $region21: #{tpu_custom_call.1} parent=0 // pred_fallthru
    _
  %v20 = vld [vmem:[%s0] sm:$0xff]
  %v21 = vld [vmem:[%s0 + $0x8] sm:$0xff]
  %v22 = vld [vmem:[%s0 + $0x10] sm:$0xff]
  %v23 = vld [vmem:[%s0 + $0x18] sm:$0xff]
  %v24 = vld [vmem:[%s0 + $0x20] sm:$0xff]
  %v25 = vld [vmem:[%s0 + $0x28] sm:$0xff]
  %v26 = vld [vmem:[%s0 + $0x30] sm:$0xff]
  %v27 = vld [vmem:[%s0 + $0x38] sm:$0xff]
  %v28 = vld [vmem:[%s0 + $0x40] sm:$0xff]
  %v29 = vld [vmem:[%s0 + $0x48] sm:$0xff]
  %v30 = vld [vmem:[%s0 + $0x50] sm:$0xff]
  %v31 = vld [vmem:[%s0 + $0x58] sm:$0xff]
  %v32 = vld [vmem:[%s0 + $0x60] sm:$0xff]
  %v33 = vld [vmem:[%s0 + $0x68] sm:$0xff]
  %v34 = vld [vmem:[%s0 + $0x70] sm:$0xff]
  %v35 = vld [vmem:[%s0 + $0x78] sm:$0xff]
  %v36 = vld [vmem:[%s0 + $0x80] sm:$0xff]
  %v37 = vld [vmem:[%s0 + $0x88] sm:$0xff]
  %v38 = vld [vmem:[%s0 + $0x90] sm:$0xff]
  %v39 = vld [vmem:[%s0 + $0x98] sm:$0xff]
  %v40 = vld [vmem:[%s0 + $0xa0] sm:$0xff]
  %v41 = vld [vmem:[%s0 + $0xa8] sm:$0xff]
  %v42 = vld [vmem:[%s0 + $0xb0] sm:$0xff]
  %v43 = vld [vmem:[%s0 + $0xb8] sm:$0xff]
  %v44 = vld [vmem:[%s0 + $0xc0] sm:$0xff]
  %v45 = vld [vmem:[%s0 + $0xc8] sm:$0xff]
  %v46 = vld [vmem:[%s0 + $0xd0] sm:$0xff]
  %v47 = vld [vmem:[%s0 + $0xd8] sm:$0xff]
  %v48 = vld [vmem:[%s0 + $0xe0] sm:$0xff]
  %v49 = vld [vmem:[%s0 + $0xe8] sm:$0xff]
  %v50 = vld [vmem:[%s0 + $0xf0] sm:$0xff]
  %v51 = vld [vmem:[%s0 + $0xf8] sm:$0xff]
  %v52 = vld [vmem:[%s0 + $0x100] sm:$0xff]
  %v53 = vld [vmem:[%s0 + $0x108] sm:$0xff]
  %v54 = vld [vmem:[%s0 + $0x110] sm:$0xff]
  %v55 = vld [vmem:[%s0 + $0x118] sm:$0xff]
  %v56 = vld [vmem:[%s0 + $0x120] sm:$0xff]
  %v57 = vld [vmem:[%s0 + $0x128] sm:$0xff]
  %v58 = vld [vmem:[%s0 + $0x130] sm:$0xff]
  %v59 = vld [vmem:[%s0 + $0x138] sm:$0xff]
  %v60 = vld [vmem:[%s0 + $0x140] sm:$0xff]
  %v61 = vld [vmem:[%s0 + $0x148] sm:$0xff]
  %v62 = vld [vmem:[%s0 + $0x150] sm:$0xff]
  %v63 = vld [vmem:[%s0 + $0x158] sm:$0xff]
  %v64 = vld [vmem:[%s0 + $0x160] sm:$0xff]
  %v65 = vld [vmem:[%s0 + $0x168] sm:$0xff]
  %v66 = vld [vmem:[%s0 + $0x170] sm:$0xff]
  %v67 = vld [vmem:[%s0 + $0x178] sm:$0xff]
  %v68 = vld [vmem:[%s0 + $0x180] sm:$0xff]
  %v69 = vld [vmem:[%s0 + $0x188] sm:$0xff]
  %v70 = vld [vmem:[%s0 + $0x190] sm:$0xff]
  %v71 = vld [vmem:[%s0 + $0x198] sm:$0xff]
  %v72 = vld [vmem:[%s0 + $0x1a0] sm:$0xff]
  %v73 = vld [vmem:[%s0 + $0x1a8] sm:$0xff]
  %v74 = vld [vmem:[%s0 + $0x1b0] sm:$0xff]
  %v75 = vld [vmem:[%s0 + $0x1b8] sm:$0xff]
  %v76 = vld [vmem:[%s0 + $0x1c0] sm:$0xff]
  %v77 = vld [vmem:[%s0 + $0x1c8] sm:$0xff]
  %v78 = vld [vmem:[%s0 + $0x1d0] sm:$0xff]
  %v79 = vld [vmem:[%s0 + $0x1d8] sm:$0xff]
  %v80 = vld [vmem:[%s0 + $0x1e0] sm:$0xff]
  %v81 = vld [vmem:[%s0 + $0x1e8] sm:$0xff]
  %v82 = vld [vmem:[%s0 + $0x1f0] sm:$0xff]
  %v83 = vld [vmem:[%s0 + $0x1f8] sm:$0xff]
  %v84 = vld [vmem:[%s1] sm:$0x1]
  %v86 = vperm.slane %v84, 0
  %v88 = vmul.f32 %v20, %v86
  %v89 = vmul.f32 %v21, %v86
  %v90 = vmul.f32 %v22, %v86
  %v91 = vmul.f32 %v23, %v86
  %v92 = vmul.f32 %v24, %v86
  %v93 = vmul.f32 %v25, %v86
  %v94 = vmul.f32 %v26, %v86
  %v95 = vmul.f32 %v27, %v86
  %v96 = vmul.f32 %v28, %v86
  %v97 = vmul.f32 %v29, %v86
  %v98 = vmul.f32 %v30, %v86
  %v99 = vmul.f32 %v31, %v86
  %v100 = vmul.f32 %v32, %v86
  %v101 = vmul.f32 %v33, %v86
  %v102 = vmul.f32 %v34, %v86
  %v103 = vmul.f32 %v35, %v86
  %v104 = vmul.f32 %v36, %v86
  %v105 = vmul.f32 %v37, %v86
  %v106 = vmul.f32 %v38, %v86
  %v107 = vmul.f32 %v39, %v86
  %v108 = vmul.f32 %v40, %v86
  %v109 = vmul.f32 %v41, %v86
  %v110 = vmul.f32 %v42, %v86
  %v111 = vmul.f32 %v43, %v86
  %v112 = vmul.f32 %v44, %v86
  %v113 = vmul.f32 %v45, %v86
  %v114 = vmul.f32 %v46, %v86
  %v115 = vmul.f32 %v47, %v86
  %v116 = vmul.f32 %v48, %v86
  %v117 = vmul.f32 %v49, %v86
  %v118 = vmul.f32 %v50, %v86
  %v119 = vmul.f32 %v51, %v86
  %v120 = vmul.f32 %v52, %v86
  %v121 = vmul.f32 %v53, %v86
  %v122 = vmul.f32 %v54, %v86
  %v123 = vmul.f32 %v55, %v86
  %v124 = vmul.f32 %v56, %v86
  %v125 = vmul.f32 %v57, %v86
  %v126 = vmul.f32 %v58, %v86
  %v127 = vmul.f32 %v59, %v86
  %v128 = vmul.f32 %v60, %v86
  %v129 = vmul.f32 %v61, %v86
  %v130 = vmul.f32 %v62, %v86
  %v131 = vmul.f32 %v63, %v86
  %v132 = vmul.f32 %v64, %v86
  %v133 = vmul.f32 %v65, %v86
  %v134 = vmul.f32 %v66, %v86
  %v135 = vmul.f32 %v67, %v86
  %v136 = vmul.f32 %v68, %v86
  %v137 = vmul.f32 %v69, %v86
  %v138 = vmul.f32 %v70, %v86
  %v139 = vmul.f32 %v71, %v86
  %v140 = vmul.f32 %v72, %v86
  %v141 = vmul.f32 %v73, %v86
  %v142 = vmul.f32 %v74, %v86
  %v143 = vmul.f32 %v75, %v86
  %v144 = vmul.f32 %v76, %v86
  %v145 = vmul.f32 %v77, %v86
  %v146 = vmul.f32 %v78, %v86
  %v147 = vmul.f32 %v79, %v86
  %v148 = vmul.f32 %v80, %v86
  %v149 = vmul.f32 %v81, %v86
  %v150 = vmul.f32 %v82, %v86
  %v151 = vmul.f32 %v83, %v86
  %v152 = vld [vmem:[%s2] sm:$0x1]
  %v154 = vperm.slane %v152, 0
  %v156 = vadd.f32 %v88, %v154
  %v157 = vadd.f32 %v89, %v154
  %v158 = vadd.f32 %v90, %v154
  %v159 = vadd.f32 %v91, %v154
  %v160 = vadd.f32 %v92, %v154
  %v161 = vadd.f32 %v93, %v154
  %v162 = vadd.f32 %v94, %v154
  %v163 = vadd.f32 %v95, %v154
  %v164 = vadd.f32 %v96, %v154
  %v165 = vadd.f32 %v97, %v154
  %v166 = vadd.f32 %v98, %v154
  %v167 = vadd.f32 %v99, %v154
  %v168 = vadd.f32 %v100, %v154
  %v169 = vadd.f32 %v101, %v154
  %v170 = vadd.f32 %v102, %v154
  %v171 = vadd.f32 %v103, %v154
  %v172 = vadd.f32 %v104, %v154
  %v173 = vadd.f32 %v105, %v154
  %v174 = vadd.f32 %v106, %v154
  %v175 = vadd.f32 %v107, %v154
  %v176 = vadd.f32 %v108, %v154
  %v177 = vadd.f32 %v109, %v154
  %v178 = vadd.f32 %v110, %v154
  %v179 = vadd.f32 %v111, %v154
  %v180 = vadd.f32 %v112, %v154
  %v181 = vadd.f32 %v113, %v154
  %v182 = vadd.f32 %v114, %v154
  %v183 = vadd.f32 %v115, %v154
  %v184 = vadd.f32 %v116, %v154
  %v185 = vadd.f32 %v117, %v154
  %v186 = vadd.f32 %v118, %v154
  %v187 = vadd.f32 %v119, %v154
  %v188 = vadd.f32 %v120, %v154
  %v189 = vadd.f32 %v121, %v154
  %v190 = vadd.f32 %v122, %v154
  %v191 = vadd.f32 %v123, %v154
  %v192 = vadd.f32 %v124, %v154
  %v193 = vadd.f32 %v125, %v154
  %v194 = vadd.f32 %v126, %v154
  %v195 = vadd.f32 %v127, %v154
  %v196 = vadd.f32 %v128, %v154
  %v197 = vadd.f32 %v129, %v154
  %v198 = vadd.f32 %v130, %v154
  %v199 = vadd.f32 %v131, %v154
  %v200 = vadd.f32 %v132, %v154
  %v201 = vadd.f32 %v133, %v154
  %v202 = vadd.f32 %v134, %v154
  %v203 = vadd.f32 %v135, %v154
  %v204 = vadd.f32 %v136, %v154
  %v205 = vadd.f32 %v137, %v154
  %v206 = vadd.f32 %v138, %v154
  %v207 = vadd.f32 %v139, %v154
  %v208 = vadd.f32 %v140, %v154
  %v209 = vadd.f32 %v141, %v154
  %v210 = vadd.f32 %v142, %v154
  %v211 = vadd.f32 %v143, %v154
  %v212 = vadd.f32 %v144, %v154
  %v213 = vadd.f32 %v145, %v154
  %v214 = vadd.f32 %v146, %v154
  %v215 = vadd.f32 %v147, %v154
  %v216 = vadd.f32 %v148, %v154
  %v217 = vadd.f32 %v149, %v154
  %v218 = vadd.f32 %v150, %v154
  %v219 = vadd.f32 %v151, %v154
  %v220 = vld [vmem:[%s3] sm:$0xff]
  %v221 = vld [vmem:[%s3 + $0x8] sm:$0xff]
  %v222 = vld [vmem:[%s3 + $0x10] sm:$0xff]
  %v223 = vld [vmem:[%s3 + $0x18] sm:$0xff]
  %v224 = vld [vmem:[%s3 + $0x20] sm:$0xff]
  %v225 = vld [vmem:[%s3 + $0x28] sm:$0xff]
  %v226 = vld [vmem:[%s3 + $0x30] sm:$0xff]
  %v227 = vld [vmem:[%s3 + $0x38] sm:$0xff]
  %v228 = vld [vmem:[%s4] sm:$0x3]
  %v230 = vperm.slane %v228, 0
  %v231 = vperm.slane %v228, 1
  %vm234 = vcmask 261120
  %v236 = vsel %vm234, %v156, 0
  %v239 = vsel %vm234, %v157, 0
  %v242 = vsel %vm234, %v158, 0
  %v245 = vsel %vm234, %v159, 0
  %v248 = vsel %vm234, %v160, 0
  %v251 = vsel %vm234, %v161, 0
  %v254 = vsel %vm234, %v162, 0
  %v257 = vsel %vm234, %v163, 0
  %v260 = vsel %vm234, %v164, 0
  %v263 = vsel %vm234, %v165, 0
  %v266 = vsel %vm234, %v166, 0
  %v269 = vsel %vm234, %v167, 0
  %v272 = vsel %vm234, %v168, 0
  %v275 = vsel %vm234, %v169, 0
  %v278 = vsel %vm234, %v170, 0
  %v281 = vsel %vm234, %v171, 0
  %v284 = vsel %vm234, %v172, 0
  %v287 = vsel %vm234, %v173, 0
  %v290 = vsel %vm234, %v174, 0
  %v293 = vsel %vm234, %v175, 0
  %v296 = vsel %vm234, %v176, 0
  %v299 = vsel %vm234, %v177, 0
  %v302 = vsel %vm234, %v178, 0
  %v305 = vsel %vm234, %v179, 0
  %v308 = vsel %vm234, %v180, 0
  %v311 = vsel %vm234, %v181, 0
  %v314 = vsel %vm234, %v182, 0
  %v317 = vsel %vm234, %v183, 0
  %v320 = vsel %vm234, %v184, 0
  %v323 = vsel %vm234, %v185, 0
  %v326 = vsel %vm234, %v186, 0
  %v329 = vsel %vm234, %v187, 0
  %v332 = vsel %vm234, %v188, 0
  %v335 = vsel %vm234, %v189, 0
  %v338 = vsel %vm234, %v190, 0
  %v341 = vsel %vm234, %v191, 0
  %v344 = vsel %vm234, %v192, 0
  %v347 = vsel %vm234, %v193, 0
  %v350 = vsel %vm234, %v194, 0
  %v353 = vsel %vm234, %v195, 0
  %v356 = vsel %vm234, %v196, 0
  %v359 = vsel %vm234, %v197, 0
  %v362 = vsel %vm234, %v198, 0
  %v365 = vsel %vm234, %v199, 0
  %v368 = vsel %vm234, %v200, 0
  %v371 = vsel %vm234, %v201, 0
  %v374 = vsel %vm234, %v202, 0
  %v377 = vsel %vm234, %v203, 0
  %v380 = vsel %vm234, %v204, 0
  %v383 = vsel %vm234, %v205, 0
  %v386 = vsel %vm234, %v206, 0
  %v389 = vsel %vm234, %v207, 0
  %v392 = vsel %vm234, %v208, 0
  %v395 = vsel %vm234, %v209, 0
  %v398 = vsel %vm234, %v210, 0
  %v401 = vsel %vm234, %v211, 0
  %v404 = vsel %vm234, %v212, 0
  %v407 = vsel %vm234, %v213, 0
  %v410 = vsel %vm234, %v214, 0
  %v413 = vsel %vm234, %v215, 0
  %v416 = vsel %vm234, %v216, 0
  %v419 = vsel %vm234, %v217, 0
  %v422 = vsel %vm234, %v218, 0
  %v425 = vsel %vm234, %v219, 0
  %427 = vmatpush.msra.mxu0 0.0
  %428 = vmatpush.msra.mxu0 0.0
  %429 = vmatpush.msra.mxu0 0.0
  %430 = vmatpush.msra.mxu0 0.0
  %431 = vmatpush.msra.mxu0 0.0
  %432 = vmatpush.msra.mxu0 0.0
  %433 = vmatpush.msra.mxu0 0.0
  %434 = vmatpush.msra.mxu0 0.0
  %435 = vmatpush.msra.mxu0 0.0
  %436 = vmatpush.msra.mxu0 0.0
  %437 = vmatpush.msra.mxu0 0.0
  %438 = vmatpush.msra.mxu0 0.0
  %439 = vmatpush.msra.mxu0 %v226
  %440 = vmatpush.msra.mxu0 %v224
  %441 = vmatpush.msra.mxu0 %v222
  %442 = vmatpush.msra.mxu0 %v220
  %443 = vmatmul.f32.gmra.mxu0 %v236
  %v444 = vpop.f32.mrf.mxu0
  %v445 = vadd.f32 %v230, %v444
  %446 = vmatmul.f32.gmra.mxu0 %v239
  %v447 = vpop.f32.mrf.mxu0
  %v448 = vadd.f32 %v230, %v447
  %449 = vmatmul.f32.gmra.mxu0 %v242
  %v450 = vpop.f32.mrf.mxu0
  %v451 = vadd.f32 %v230, %v450
  %452 = vmatmul.f32.gmra.mxu0 %v245
  %v453 = vpop.f32.mrf.mxu0
  %v454 = vadd.f32 %v230, %v453
  %455 = vmatmul.f32.gmra.mxu0 %v248
  %v456 = vpop.f32.mrf.mxu0
  %v457 = vadd.f32 %v230, %v456
  %458 = vmatmul.f32.gmra.mxu0 %v251
  %v459 = vpop.f32.mrf.mxu0
  %v460 = vadd.f32 %v230, %v459
  %461 = vmatmul.f32.gmra.mxu0 %v254
  %v462 = vpop.f32.mrf.mxu0
  %v463 = vadd.f32 %v230, %v462
  %464 = vmatmul.f32.gmra.mxu0 %v257
  %v465 = vpop.f32.mrf.mxu0
  %v466 = vadd.f32 %v230, %v465
  %467 = vmatmul.f32.gmra.mxu0 %v260
  %v468 = vpop.f32.mrf.mxu0
  %v469 = vadd.f32 %v230, %v468
  %470 = vmatmul.f32.gmra.mxu0 %v263
  %v471 = vpop.f32.mrf.mxu0
  %v472 = vadd.f32 %v230, %v471
  %473 = vmatmul.f32.gmra.mxu0 %v266
  %v474 = vpop.f32.mrf.mxu0
  %v475 = vadd.f32 %v230, %v474
  %476 = vmatmul.f32.gmra.mxu0 %v269
  %v477 = vpop.f32.mrf.mxu0
  %v478 = vadd.f32 %v230, %v477
  %479 = vmatmul.f32.gmra.mxu0 %v272
  %v480 = vpop.f32.mrf.mxu0
  %v481 = vadd.f32 %v230, %v480
  %482 = vmatmul.f32.gmra.mxu0 %v275
  %v483 = vpop.f32.mrf.mxu0
  %v484 = vadd.f32 %v230, %v483
  %485 = vmatmul.f32.gmra.mxu0 %v278
  %v486 = vpop.f32.mrf.mxu0
  %v487 = vadd.f32 %v230, %v486
  %488 = vmatmul.f32.gmra.mxu0 %v281
  %v489 = vpop.f32.mrf.mxu0
  %v490 = vadd.f32 %v230, %v489
  %491 = vmatmul.f32.gmra.mxu0 %v284
  %v492 = vpop.f32.mrf.mxu0
  %v493 = vadd.f32 %v230, %v492
  %494 = vmatmul.f32.gmra.mxu0 %v287
  %v495 = vpop.f32.mrf.mxu0
  %v496 = vadd.f32 %v230, %v495
  %497 = vmatmul.f32.gmra.mxu0 %v290
  %v498 = vpop.f32.mrf.mxu0
  %v499 = vadd.f32 %v230, %v498
  %500 = vmatmul.f32.gmra.mxu0 %v293
  %v501 = vpop.f32.mrf.mxu0
  %v502 = vadd.f32 %v230, %v501
  %503 = vmatmul.f32.gmra.mxu0 %v296
  %v504 = vpop.f32.mrf.mxu0
  %v505 = vadd.f32 %v230, %v504
  %506 = vmatmul.f32.gmra.mxu0 %v299
  %v507 = vpop.f32.mrf.mxu0
  %v508 = vadd.f32 %v230, %v507
  %509 = vmatmul.f32.gmra.mxu0 %v302
  %v510 = vpop.f32.mrf.mxu0
  %v511 = vadd.f32 %v230, %v510
  %512 = vmatmul.f32.gmra.mxu0 %v305
  %v513 = vpop.f32.mrf.mxu0
  %v514 = vadd.f32 %v230, %v513
  %515 = vmatmul.f32.gmra.mxu0 %v308
  %v516 = vpop.f32.mrf.mxu0
  %v517 = vadd.f32 %v230, %v516
  %518 = vmatmul.f32.gmra.mxu0 %v311
  %v519 = vpop.f32.mrf.mxu0
  %v520 = vadd.f32 %v230, %v519
  %521 = vmatmul.f32.gmra.mxu0 %v314
  %v522 = vpop.f32.mrf.mxu0
  %v523 = vadd.f32 %v230, %v522
  %524 = vmatmul.f32.gmra.mxu0 %v317
  %v525 = vpop.f32.mrf.mxu0
  %v526 = vadd.f32 %v230, %v525
  %527 = vmatmul.f32.gmra.mxu0 %v320
  %v528 = vpop.f32.mrf.mxu0
  %v529 = vadd.f32 %v230, %v528
  %530 = vmatmul.f32.gmra.mxu0 %v323
  %v531 = vpop.f32.mrf.mxu0
  %v532 = vadd.f32 %v230, %v531
  %533 = vmatmul.f32.gmra.mxu0 %v326
  %v534 = vpop.f32.mrf.mxu0
  %v535 = vadd.f32 %v230, %v534
  %536 = vmatmul.f32.gmra.mxu0 %v329
  %v537 = vpop.f32.mrf.mxu0
  %v538 = vadd.f32 %v230, %v537
  %539 = vmatmul.f32.gmra.mxu0 %v332
  %v540 = vpop.f32.mrf.mxu0
  %v541 = vadd.f32 %v230, %v540
  %542 = vmatmul.f32.gmra.mxu0 %v335
  %v543 = vpop.f32.mrf.mxu0
  %v544 = vadd.f32 %v230, %v543
  %545 = vmatmul.f32.gmra.mxu0 %v338
  %v546 = vpop.f32.mrf.mxu0
  %v547 = vadd.f32 %v230, %v546
  %548 = vmatmul.f32.gmra.mxu0 %v341
  %v549 = vpop.f32.mrf.mxu0
  %v550 = vadd.f32 %v230, %v549
  %551 = vmatmul.f32.gmra.mxu0 %v344
  %v552 = vpop.f32.mrf.mxu0
  %v553 = vadd.f32 %v230, %v552
  %554 = vmatmul.f32.gmra.mxu0 %v347
  %v555 = vpop.f32.mrf.mxu0
  %v556 = vadd.f32 %v230, %v555
  %557 = vmatmul.f32.gmra.mxu0 %v350
  %v558 = vpop.f32.mrf.mxu0
  %v559 = vadd.f32 %v230, %v558
  %560 = vmatmul.f32.gmra.mxu0 %v353
  %v561 = vpop.f32.mrf.mxu0
  %v562 = vadd.f32 %v230, %v561
  %563 = vmatmul.f32.gmra.mxu0 %v356
  %v564 = vpop.f32.mrf.mxu0
  %v565 = vadd.f32 %v230, %v564
  %566 = vmatmul.f32.gmra.mxu0 %v359
  %v567 = vpop.f32.mrf.mxu0
  %v568 = vadd.f32 %v230, %v567
  %569 = vmatmul.f32.gmra.mxu0 %v362
  %v570 = vpop.f32.mrf.mxu0
  %v571 = vadd.f32 %v230, %v570
  %572 = vmatmul.f32.gmra.mxu0 %v365
  %v573 = vpop.f32.mrf.mxu0
  %v574 = vadd.f32 %v230, %v573
  %575 = vmatmul.f32.gmra.mxu0 %v368
  %v576 = vpop.f32.mrf.mxu0
  %v577 = vadd.f32 %v230, %v576
  %578 = vmatmul.f32.gmra.mxu0 %v371
  %v579 = vpop.f32.mrf.mxu0
  %v580 = vadd.f32 %v230, %v579
  %581 = vmatmul.f32.gmra.mxu0 %v374
  %v582 = vpop.f32.mrf.mxu0
  %v583 = vadd.f32 %v230, %v582
  %584 = vmatmul.f32.gmra.mxu0 %v377
  %v585 = vpop.f32.mrf.mxu0
  %v586 = vadd.f32 %v230, %v585
  %587 = vmatmul.f32.gmra.mxu0 %v380
  %v588 = vpop.f32.mrf.mxu0
  %v589 = vadd.f32 %v230, %v588
  %590 = vmatmul.f32.gmra.mxu0 %v383
  %v591 = vpop.f32.mrf.mxu0
  %v592 = vadd.f32 %v230, %v591
  %593 = vmatmul.f32.gmra.mxu0 %v386
  %v594 = vpop.f32.mrf.mxu0
  %v595 = vadd.f32 %v230, %v594
  %596 = vmatmul.f32.gmra.mxu0 %v389
  %v597 = vpop.f32.mrf.mxu0
  %v598 = vadd.f32 %v230, %v597
  %599 = vmatmul.f32.gmra.mxu0 %v392
  %v600 = vpop.f32.mrf.mxu0
  %v601 = vadd.f32 %v230, %v600
  %602 = vmatmul.f32.gmra.mxu0 %v395
  %v603 = vpop.f32.mrf.mxu0
  %v604 = vadd.f32 %v230, %v603
  %605 = vmatmul.f32.gmra.mxu0 %v398
  %v606 = vpop.f32.mrf.mxu0
  %v607 = vadd.f32 %v230, %v606
  %608 = vmatmul.f32.gmra.mxu0 %v401
  %v609 = vpop.f32.mrf.mxu0
  %v610 = vadd.f32 %v230, %v609
  %611 = vmatmul.f32.gmra.mxu0 %v404
  %v612 = vpop.f32.mrf.mxu0
  %v613 = vadd.f32 %v230, %v612
  %614 = vmatmul.f32.gmra.mxu0 %v407
  %v615 = vpop.f32.mrf.mxu0
  %v616 = vadd.f32 %v230, %v615
  %617 = vmatmul.f32.gmra.mxu0 %v410
  %v618 = vpop.f32.mrf.mxu0
  %v619 = vadd.f32 %v230, %v618
  %620 = vmatmul.f32.gmra.mxu0 %v413
  %v621 = vpop.f32.mrf.mxu0
  %v622 = vadd.f32 %v230, %v621
  %623 = vmatmul.f32.gmra.mxu0 %v416
  %v624 = vpop.f32.mrf.mxu0
  %v625 = vadd.f32 %v230, %v624
  %626 = vmatmul.f32.gmra.mxu0 %v419
  %v627 = vpop.f32.mrf.mxu0
  %v628 = vadd.f32 %v230, %v627
  %629 = vmatmul.f32.gmra.mxu0 %v422
  %v630 = vpop.f32.mrf.mxu0
  %v631 = vadd.f32 %v230, %v630
  %632 = vmatmul.f32.gmra.mxu0 %v425
  %v633 = vpop.f32.mrf.mxu0
  %v634 = vadd.f32 %v230, %v633
  %635 = vdwg.mxu0
  %636 = vmatpush.msra.mxu0 0.0
  %637 = vmatpush.msra.mxu0 0.0
  %638 = vmatpush.msra.mxu0 0.0
  %639 = vmatpush.msra.mxu0 0.0
  %640 = vmatpush.msra.mxu0 0.0
  %641 = vmatpush.msra.mxu0 0.0
  %642 = vmatpush.msra.mxu0 0.0
  %643 = vmatpush.msra.mxu0 0.0
  %644 = vmatpush.msra.mxu0 0.0
  %645 = vmatpush.msra.mxu0 0.0
  %646 = vmatpush.msra.mxu0 0.0
  %647 = vmatpush.msra.mxu0 0.0
  %648 = vmatpush.msra.mxu0 %v227
  %649 = vmatpush.msra.mxu0 %v225
  %650 = vmatpush.msra.mxu0 %v223
  %651 = vmatpush.msra.mxu0 %v221
  %652 = vmatmul.f32.gmra.mxu0 %v236
  %v653 = vpop.f32.mrf.mxu0
  %v654 = vadd.f32 %v231, %v653
  %655 = vmatmul.f32.gmra.mxu0 %v239
  %v656 = vpop.f32.mrf.mxu0
  %v657 = vadd.f32 %v231, %v656
  %658 = vmatmul.f32.gmra.mxu0 %v242
  %v659 = vpop.f32.mrf.mxu0
  %v660 = vadd.f32 %v231, %v659
  %661 = vmatmul.f32.gmra.mxu0 %v245
  %v662 = vpop.f32.mrf.mxu0
  %v663 = vadd.f32 %v231, %v662
  %664 = vmatmul.f32.gmra.mxu0 %v248
  %v665 = vpop.f32.mrf.mxu0
  %v666 = vadd.f32 %v231, %v665
  %667 = vmatmul.f32.gmra.mxu0 %v251
  %v668 = vpop.f32.mrf.mxu0
  %v669 = vadd.f32 %v231, %v668
  %670 = vmatmul.f32.gmra.mxu0 %v254
  %v671 = vpop.f32.mrf.mxu0
  %v672 = vadd.f32 %v231, %v671
  %673 = vmatmul.f32.gmra.mxu0 %v257
  %v674 = vpop.f32.mrf.mxu0
  %v675 = vadd.f32 %v231, %v674
  %676 = vmatmul.f32.gmra.mxu0 %v260
  %v677 = vpop.f32.mrf.mxu0
  %v678 = vadd.f32 %v231, %v677
  %679 = vmatmul.f32.gmra.mxu0 %v263
  %v680 = vpop.f32.mrf.mxu0
  %v681 = vadd.f32 %v231, %v680
  %682 = vmatmul.f32.gmra.mxu0 %v266
  %v683 = vpop.f32.mrf.mxu0
  %v684 = vadd.f32 %v231, %v683
  %685 = vmatmul.f32.gmra.mxu0 %v269
  %v686 = vpop.f32.mrf.mxu0
  %v687 = vadd.f32 %v231, %v686
  %688 = vmatmul.f32.gmra.mxu0 %v272
  %v689 = vpop.f32.mrf.mxu0
  %v690 = vadd.f32 %v231, %v689
  %691 = vmatmul.f32.gmra.mxu0 %v275
  %v692 = vpop.f32.mrf.mxu0
  %v693 = vadd.f32 %v231, %v692
  %694 = vmatmul.f32.gmra.mxu0 %v278
  %v695 = vpop.f32.mrf.mxu0
  %v696 = vadd.f32 %v231, %v695
  %697 = vmatmul.f32.gmra.mxu0 %v281
  %v698 = vpop.f32.mrf.mxu0
  %v699 = vadd.f32 %v231, %v698
  %700 = vmatmul.f32.gmra.mxu0 %v284
  %v701 = vpop.f32.mrf.mxu0
  %v702 = vadd.f32 %v231, %v701
  %703 = vmatmul.f32.gmra.mxu0 %v287
  %v704 = vpop.f32.mrf.mxu0
  %v705 = vadd.f32 %v231, %v704
  %706 = vmatmul.f32.gmra.mxu0 %v290
  %v707 = vpop.f32.mrf.mxu0
  %v708 = vadd.f32 %v231, %v707
  %709 = vmatmul.f32.gmra.mxu0 %v293
  %v710 = vpop.f32.mrf.mxu0
  %v711 = vadd.f32 %v231, %v710
  %712 = vmatmul.f32.gmra.mxu0 %v296
  %v713 = vpop.f32.mrf.mxu0
  %v714 = vadd.f32 %v231, %v713
  %715 = vmatmul.f32.gmra.mxu0 %v299
  %v716 = vpop.f32.mrf.mxu0
  %v717 = vadd.f32 %v231, %v716
  %718 = vmatmul.f32.gmra.mxu0 %v302
  %v719 = vpop.f32.mrf.mxu0
  %v720 = vadd.f32 %v231, %v719
  %721 = vmatmul.f32.gmra.mxu0 %v305
  %v722 = vpop.f32.mrf.mxu0
  %v723 = vadd.f32 %v231, %v722
  %724 = vmatmul.f32.gmra.mxu0 %v308
  %v725 = vpop.f32.mrf.mxu0
  %v726 = vadd.f32 %v231, %v725
  %727 = vmatmul.f32.gmra.mxu0 %v311
  %v728 = vpop.f32.mrf.mxu0
  %v729 = vadd.f32 %v231, %v728
  %730 = vmatmul.f32.gmra.mxu0 %v314
  %v731 = vpop.f32.mrf.mxu0
  %v732 = vadd.f32 %v231, %v731
  %733 = vmatmul.f32.gmra.mxu0 %v317
  %v734 = vpop.f32.mrf.mxu0
  %v735 = vadd.f32 %v231, %v734
  %736 = vmatmul.f32.gmra.mxu0 %v320
  %v737 = vpop.f32.mrf.mxu0
  %v738 = vadd.f32 %v231, %v737
  %739 = vmatmul.f32.gmra.mxu0 %v323
  %v740 = vpop.f32.mrf.mxu0
  %v741 = vadd.f32 %v231, %v740
  %742 = vmatmul.f32.gmra.mxu0 %v326
  %v743 = vpop.f32.mrf.mxu0
  %v744 = vadd.f32 %v231, %v743
  %745 = vmatmul.f32.gmra.mxu0 %v329
  %v746 = vpop.f32.mrf.mxu0
  %v747 = vadd.f32 %v231, %v746
  %748 = vmatmul.f32.gmra.mxu0 %v332
  %v749 = vpop.f32.mrf.mxu0
  %v750 = vadd.f32 %v231, %v749
  %751 = vmatmul.f32.gmra.mxu0 %v335
  %v752 = vpop.f32.mrf.mxu0
  %v753 = vadd.f32 %v231, %v752
  %754 = vmatmul.f32.gmra.mxu0 %v338
  %v755 = vpop.f32.mrf.mxu0
  %v756 = vadd.f32 %v231, %v755
  %757 = vmatmul.f32.gmra.mxu0 %v341
  %v758 = vpop.f32.mrf.mxu0
  %v759 = vadd.f32 %v231, %v758
  %760 = vmatmul.f32.gmra.mxu0 %v344
  %v761 = vpop.f32.mrf.mxu0
  %v762 = vadd.f32 %v231, %v761
  %763 = vmatmul.f32.gmra.mxu0 %v347
  %v764 = vpop.f32.mrf.mxu0
  %v765 = vadd.f32 %v231, %v764
  %766 = vmatmul.f32.gmra.mxu0 %v350
  %v767 = vpop.f32.mrf.mxu0
  %v768 = vadd.f32 %v231, %v767
  %769 = vmatmul.f32.gmra.mxu0 %v353
  %v770 = vpop.f32.mrf.mxu0
  %v771 = vadd.f32 %v231, %v770
  %772 = vmatmul.f32.gmra.mxu0 %v356
  %v773 = vpop.f32.mrf.mxu0
  %v774 = vadd.f32 %v231, %v773
  %775 = vmatmul.f32.gmra.mxu0 %v359
  %v776 = vpop.f32.mrf.mxu0
  %v777 = vadd.f32 %v231, %v776
  %778 = vmatmul.f32.gmra.mxu0 %v362
  %v779 = vpop.f32.mrf.mxu0
  %v780 = vadd.f32 %v231, %v779
  %781 = vmatmul.f32.gmra.mxu0 %v365
  %v782 = vpop.f32.mrf.mxu0
  %v783 = vadd.f32 %v231, %v782
  %784 = vmatmul.f32.gmra.mxu0 %v368
  %v785 = vpop.f32.mrf.mxu0
  %v786 = vadd.f32 %v231, %v785
  %787 = vmatmul.f32.gmra.mxu0 %v371
  %v788 = vpop.f32.mrf.mxu0
  %v789 = vadd.f32 %v231, %v788
  %790 = vmatmul.f32.gmra.mxu0 %v374
  %v791 = vpop.f32.mrf.mxu0
  %v792 = vadd.f32 %v231, %v791
  %793 = vmatmul.f32.gmra.mxu0 %v377
  %v794 = vpop.f32.mrf.mxu0
  %v795 = vadd.f32 %v231, %v794
  %796 = vmatmul.f32.gmra.mxu0 %v380
  %v797 = vpop.f32.mrf.mxu0
  %v798 = vadd.f32 %v231, %v797
  %799 = vmatmul.f32.gmra.mxu0 %v383
  %v800 = vpop.f32.mrf.mxu0
  %v801 = vadd.f32 %v231, %v800
  %802 = vmatmul.f32.gmra.mxu0 %v386
  %v803 = vpop.f32.mrf.mxu0
  %v804 = vadd.f32 %v231, %v803
  %805 = vmatmul.f32.gmra.mxu0 %v389
  %v806 = vpop.f32.mrf.mxu0
  %v807 = vadd.f32 %v231, %v806
  %808 = vmatmul.f32.gmra.mxu0 %v392
  %v809 = vpop.f32.mrf.mxu0
  %v810 = vadd.f32 %v231, %v809
  %811 = vmatmul.f32.gmra.mxu0 %v395
  %v812 = vpop.f32.mrf.mxu0
  %v813 = vadd.f32 %v231, %v812
  %814 = vmatmul.f32.gmra.mxu0 %v398
  %v815 = vpop.f32.mrf.mxu0
  %v816 = vadd.f32 %v231, %v815
  %817 = vmatmul.f32.gmra.mxu0 %v401
  %v818 = vpop.f32.mrf.mxu0
  %v819 = vadd.f32 %v231, %v818
  %820 = vmatmul.f32.gmra.mxu0 %v404
  %v821 = vpop.f32.mrf.mxu0
  %v822 = vadd.f32 %v231, %v821
  %823 = vmatmul.f32.gmra.mxu0 %v407
  %v824 = vpop.f32.mrf.mxu0
  %v825 = vadd.f32 %v231, %v824
  %826 = vmatmul.f32.gmra.mxu0 %v410
  %v827 = vpop.f32.mrf.mxu0
  %v828 = vadd.f32 %v231, %v827
  %829 = vmatmul.f32.gmra.mxu0 %v413
  %v830 = vpop.f32.mrf.mxu0
  %v831 = vadd.f32 %v231, %v830
  %832 = vmatmul.f32.gmra.mxu0 %v416
  %v833 = vpop.f32.mrf.mxu0
  %v834 = vadd.f32 %v231, %v833
  %835 = vmatmul.f32.gmra.mxu0 %v419
  %v836 = vpop.f32.mrf.mxu0
  %v837 = vadd.f32 %v231, %v836
  %838 = vmatmul.f32.gmra.mxu0 %v422
  %v839 = vpop.f32.mrf.mxu0
  %v840 = vadd.f32 %v231, %v839
  %841 = vmatmul.f32.gmra.mxu0 %v425
  %v842 = vpop.f32.mrf.mxu0
  %v843 = vadd.f32 %v231, %v842
  %844 = vdwg.mxu0
  %v845 = vtanh.pop %v445
  %v846 = vtanh.pop %v654
  %v847 = vtanh.pop %v448
  %v848 = vtanh.pop %v657
  %v849 = vtanh.pop %v451
  %v850 = vtanh.pop %v660
  %v851 = vtanh.pop %v454
  %v852 = vtanh.pop %v663
  %v853 = vtanh.pop %v457
  %v854 = vtanh.pop %v666
  %v855 = vtanh.pop %v460
  %v856 = vtanh.pop %v669
  %v857 = vtanh.pop %v463
  %v858 = vtanh.pop %v672
  %v859 = vtanh.pop %v466
  %v860 = vtanh.pop %v675
  %v861 = vtanh.pop %v469
  %v862 = vtanh.pop %v678
  %v863 = vtanh.pop %v472
  %v864 = vtanh.pop %v681
  %v865 = vtanh.pop %v475
  %v866 = vtanh.pop %v684
  %v867 = vtanh.pop %v478
  %v868 = vtanh.pop %v687
  %v869 = vtanh.pop %v481
  %v870 = vtanh.pop %v690
  %v871 = vtanh.pop %v484
  %v872 = vtanh.pop %v693
  %v873 = vtanh.pop %v487
  %v874 = vtanh.pop %v696
  %v875 = vtanh.pop %v490
  %v876 = vtanh.pop %v699
  %v877 = vtanh.pop %v493
  %v878 = vtanh.pop %v702
  %v879 = vtanh.pop %v496
  %v880 = vtanh.pop %v705
  %v881 = vtanh.pop %v499
  %v882 = vtanh.pop %v708
  %v883 = vtanh.pop %v502
  %v884 = vtanh.pop %v711
  %v885 = vtanh.pop %v505
  %v886 = vtanh.pop %v714
  %v887 = vtanh.pop %v508
  %v888 = vtanh.pop %v717
  %v889 = vtanh.pop %v511
  %v890 = vtanh.pop %v720
  %v891 = vtanh.pop %v514
  %v892 = vtanh.pop %v723
  %v893 = vtanh.pop %v517
  %v894 = vtanh.pop %v726
  %v895 = vtanh.pop %v520
  %v896 = vtanh.pop %v729
  %v897 = vtanh.pop %v523
  %v898 = vtanh.pop %v732
  %v899 = vtanh.pop %v526
  %v900 = vtanh.pop %v735
  %v901 = vtanh.pop %v529
  %v902 = vtanh.pop %v738
  %v903 = vtanh.pop %v532
  %v904 = vtanh.pop %v741
  %v905 = vtanh.pop %v535
  %v906 = vtanh.pop %v744
  %v907 = vtanh.pop %v538
  %v908 = vtanh.pop %v747
  %v909 = vtanh.pop %v541
  %v910 = vtanh.pop %v750
  %v911 = vtanh.pop %v544
  %v912 = vtanh.pop %v753
  %v913 = vtanh.pop %v547
  %v914 = vtanh.pop %v756
  %v915 = vtanh.pop %v550
  %v916 = vtanh.pop %v759
  %v917 = vtanh.pop %v553
  %v918 = vtanh.pop %v762
  %v919 = vtanh.pop %v556
  %v920 = vtanh.pop %v765
  %v921 = vtanh.pop %v559
  %v922 = vtanh.pop %v768
  %v923 = vtanh.pop %v562
  %v924 = vtanh.pop %v771
  %v925 = vtanh.pop %v565
  %v926 = vtanh.pop %v774
  %v927 = vtanh.pop %v568
  %v928 = vtanh.pop %v777
  %v929 = vtanh.pop %v571
  %v930 = vtanh.pop %v780
  %v931 = vtanh.pop %v574
  %v932 = vtanh.pop %v783
  %v933 = vtanh.pop %v577
  %v934 = vtanh.pop %v786
  %v935 = vtanh.pop %v580
  %v936 = vtanh.pop %v789
  %v937 = vtanh.pop %v583
  %v938 = vtanh.pop %v792
  %v939 = vtanh.pop %v586
  %v940 = vtanh.pop %v795
  %v941 = vtanh.pop %v589
  %v942 = vtanh.pop %v798
  %v943 = vtanh.pop %v592
  %v944 = vtanh.pop %v801
  %v945 = vtanh.pop %v595
  %v946 = vtanh.pop %v804
  %v947 = vtanh.pop %v598
  %v948 = vtanh.pop %v807
  %v949 = vtanh.pop %v601
  %v950 = vtanh.pop %v810
  %v951 = vtanh.pop %v604
  %v952 = vtanh.pop %v813
  %v953 = vtanh.pop %v607
  %v954 = vtanh.pop %v816
  %v955 = vtanh.pop %v610
  %v956 = vtanh.pop %v819
  %v957 = vtanh.pop %v613
  %v958 = vtanh.pop %v822
  %v959 = vtanh.pop %v616
  %v960 = vtanh.pop %v825
  %v961 = vtanh.pop %v619
  %v962 = vtanh.pop %v828
  %v963 = vtanh.pop %v622
  %v964 = vtanh.pop %v831
  %v965 = vtanh.pop %v625
  %v966 = vtanh.pop %v834
  %v967 = vtanh.pop %v628
  %v968 = vtanh.pop %v837
  %v969 = vtanh.pop %v631
  %v970 = vtanh.pop %v840
  %v971 = vtanh.pop %v634
  %v972 = vtanh.pop %v843
  %973 = vst [vmem:[%s5] sm:$0xff] %v845
  %vm974 = vcmask 97280
  %975 = vst.msk [vmem:[%s5 + $0x8] sm:$0xff] %vm974, %v846
  %976 = vst [vmem:[%s5 + $0x10] sm:$0xff] %v847
  %977 = vst.msk [vmem:[%s5 + $0x18] sm:$0xff] %vm974, %v848
  %978 = vst [vmem:[%s5 + $0x20] sm:$0xff] %v849
  %979 = vst.msk [vmem:[%s5 + $0x28] sm:$0xff] %vm974, %v850
  %980 = vst [vmem:[%s5 + $0x30] sm:$0xff] %v851
  %981 = vst.msk [vmem:[%s5 + $0x38] sm:$0xff] %vm974, %v852
  %982 = vst [vmem:[%s5 + $0x40] sm:$0xff] %v853
  %983 = vst.msk [vmem:[%s5 + $0x48] sm:$0xff] %vm974, %v854
  %984 = vst [vmem:[%s5 + $0x50] sm:$0xff] %v855
  %985 = vst.msk [vmem:[%s5 + $0x58] sm:$0xff] %vm974, %v856
  %986 = vst [vmem:[%s5 + $0x60] sm:$0xff] %v857
  %987 = vst.msk [vmem:[%s5 + $0x68] sm:$0xff] %vm974, %v858
  %988 = vst [vmem:[%s5 + $0x70] sm:$0xff] %v859
  %989 = vst.msk [vmem:[%s5 + $0x78] sm:$0xff] %vm974, %v860
  %990 = vst [vmem:[%s5 + $0x80] sm:$0xff] %v861
  %991 = vst.msk [vmem:[%s5 + $0x88] sm:$0xff] %vm974, %v862
  %992 = vst [vmem:[%s5 + $0x90] sm:$0xff] %v863
  %993 = vst.msk [vmem:[%s5 + $0x98] sm:$0xff] %vm974, %v864
  %994 = vst [vmem:[%s5 + $0xa0] sm:$0xff] %v865
  %995 = vst.msk [vmem:[%s5 + $0xa8] sm:$0xff] %vm974, %v866
  %996 = vst [vmem:[%s5 + $0xb0] sm:$0xff] %v867
  %997 = vst.msk [vmem:[%s5 + $0xb8] sm:$0xff] %vm974, %v868
  %998 = vst [vmem:[%s5 + $0xc0] sm:$0xff] %v869
  %999 = vst.msk [vmem:[%s5 + $0xc8] sm:$0xff] %vm974, %v870
  %1000 = vst [vmem:[%s5 + $0xd0] sm:$0xff] %v871
  %1001 = vst.msk [vmem:[%s5 + $0xd8] sm:$0xff] %vm974, %v872
  %1002 = vst [vmem:[%s5 + $0xe0] sm:$0xff] %v873
  %1003 = vst.msk [vmem:[%s5 + $0xe8] sm:$0xff] %vm974, %v874
  %1004 = vst [vmem:[%s5 + $0xf0] sm:$0xff] %v875
  %1005 = vst.msk [vmem:[%s5 + $0xf8] sm:$0xff] %vm974, %v876
  %1006 = vst [vmem:[%s5 + $0x100] sm:$0xff] %v877
  %1007 = vst.msk [vmem:[%s5 + $0x108] sm:$0xff] %vm974, %v878
  %1008 = vst [vmem:[%s5 + $0x110] sm:$0xff] %v879
  %1009 = vst.msk [vmem:[%s5 + $0x118] sm:$0xff] %vm974, %v880
  %1010 = vst [vmem:[%s5 + $0x120] sm:$0xff] %v881
  %1011 = vst.msk [vmem:[%s5 + $0x128] sm:$0xff] %vm974, %v882
  %1012 = vst [vmem:[%s5 + $0x130] sm:$0xff] %v883
  %1013 = vst.msk [vmem:[%s5 + $0x138] sm:$0xff] %vm974, %v884
  %1014 = vst [vmem:[%s5 + $0x140] sm:$0xff] %v885
  %1015 = vst.msk [vmem:[%s5 + $0x148] sm:$0xff] %vm974, %v886
  %1016 = vst [vmem:[%s5 + $0x150] sm:$0xff] %v887
  %1017 = vst.msk [vmem:[%s5 + $0x158] sm:$0xff] %vm974, %v888
  %1018 = vst [vmem:[%s5 + $0x160] sm:$0xff] %v889
  %1019 = vst.msk [vmem:[%s5 + $0x168] sm:$0xff] %vm974, %v890
  %1020 = vst [vmem:[%s5 + $0x170] sm:$0xff] %v891
  %1021 = vst.msk [vmem:[%s5 + $0x178] sm:$0xff] %vm974, %v892
  %1022 = vst [vmem:[%s5 + $0x180] sm:$0xff] %v893
  %1023 = vst.msk [vmem:[%s5 + $0x188] sm:$0xff] %vm974, %v894
  %1024 = vst [vmem:[%s5 + $0x190] sm:$0xff] %v895
  %1025 = vst.msk [vmem:[%s5 + $0x198] sm:$0xff] %vm974, %v896
  %1026 = vst [vmem:[%s5 + $0x1a0] sm:$0xff] %v897
  %1027 = vst.msk [vmem:[%s5 + $0x1a8] sm:$0xff] %vm974, %v898
  %1028 = vst [vmem:[%s5 + $0x1b0] sm:$0xff] %v899
  %1029 = vst.msk [vmem:[%s5 + $0x1b8] sm:$0xff] %vm974, %v900
  %1030 = vst [vmem:[%s5 + $0x1c0] sm:$0xff] %v901
  %1031 = vst.msk [vmem:[%s5 + $0x1c8] sm:$0xff] %vm974, %v902
  %1032 = vst [vmem:[%s5 + $0x1d0] sm:$0xff] %v903
  %1033 = vst.msk [vmem:[%s5 + $0x1d8] sm:$0xff] %vm974, %v904
  %1034 = vst [vmem:[%s5 + $0x1e0] sm:$0xff] %v905
  %1035 = vst.msk [vmem:[%s5 + $0x1e8] sm:$0xff] %vm974, %v906
  %1036 = vst [vmem:[%s5 + $0x1f0] sm:$0xff] %v907
  %1037 = vst.msk [vmem:[%s5 + $0x1f8] sm:$0xff] %vm974, %v908
  %1038 = vst [vmem:[%s5 + $0x200] sm:$0xff] %v909
  %1039 = vst.msk [vmem:[%s5 + $0x208] sm:$0xff] %vm974, %v910
  %1040 = vst [vmem:[%s5 + $0x210] sm:$0xff] %v911
  %1041 = vst.msk [vmem:[%s5 + $0x218] sm:$0xff] %vm974, %v912
  %1042 = vst [vmem:[%s5 + $0x220] sm:$0xff] %v913
  %1043 = vst.msk [vmem:[%s5 + $0x228] sm:$0xff] %vm974, %v914
  %1044 = vst [vmem:[%s5 + $0x230] sm:$0xff] %v915
  %1045 = vst.msk [vmem:[%s5 + $0x238] sm:$0xff] %vm974, %v916
  %1046 = vst [vmem:[%s5 + $0x240] sm:$0xff] %v917
  %1047 = vst.msk [vmem:[%s5 + $0x248] sm:$0xff] %vm974, %v918
  %1048 = vst [vmem:[%s5 + $0x250] sm:$0xff] %v919
  %1049 = vst.msk [vmem:[%s5 + $0x258] sm:$0xff] %vm974, %v920
  %1050 = vst [vmem:[%s5 + $0x260] sm:$0xff] %v921
  %1051 = vst.msk [vmem:[%s5 + $0x268] sm:$0xff] %vm974, %v922
  %1052 = vst [vmem:[%s5 + $0x270] sm:$0xff] %v923
  %1053 = vst.msk [vmem:[%s5 + $0x278] sm:$0xff] %vm974, %v924
  %1054 = vst [vmem:[%s5 + $0x280] sm:$0xff] %v925
  %1055 = vst.msk [vmem:[%s5 + $0x288] sm:$0xff] %vm974, %v926
  %1056 = vst [vmem:[%s5 + $0x290] sm:$0xff] %v927
  %1057 = vst.msk [vmem:[%s5 + $0x298] sm:$0xff] %vm974, %v928
  %1058 = vst [vmem:[%s5 + $0x2a0] sm:$0xff] %v929
  %1059 = vst.msk [vmem:[%s5 + $0x2a8] sm:$0xff] %vm974, %v930
  %1060 = vst [vmem:[%s5 + $0x2b0] sm:$0xff] %v931
  %1061 = vst.msk [vmem:[%s5 + $0x2b8] sm:$0xff] %vm974, %v932
  %1062 = vst [vmem:[%s5 + $0x2c0] sm:$0xff] %v933
  %1063 = vst.msk [vmem:[%s5 + $0x2c8] sm:$0xff] %vm974, %v934
  %1064 = vst [vmem:[%s5 + $0x2d0] sm:$0xff] %v935
  %1065 = vst.msk [vmem:[%s5 + $0x2d8] sm:$0xff] %vm974, %v936
  %1066 = vst [vmem:[%s5 + $0x2e0] sm:$0xff] %v937
  %1067 = vst.msk [vmem:[%s5 + $0x2e8] sm:$0xff] %vm974, %v938
  %1068 = vst [vmem:[%s5 + $0x2f0] sm:$0xff] %v939
  %1069 = vst.msk [vmem:[%s5 + $0x2f8] sm:$0xff] %vm974, %v940
  %1070 = vst [vmem:[%s5 + $0x300] sm:$0xff] %v941
  %1071 = vst.msk [vmem:[%s5 + $0x308] sm:$0xff] %vm974, %v942
  %1072 = vst [vmem:[%s5 + $0x310] sm:$0xff] %v943
  %1073 = vst.msk [vmem:[%s5 + $0x318] sm:$0xff] %vm974, %v944
  %1074 = vst [vmem:[%s5 + $0x320] sm:$0xff] %v945
  %1075 = vst.msk [vmem:[%s5 + $0x328] sm:$0xff] %vm974, %v946
  %1076 = vst [vmem:[%s5 + $0x330] sm:$0xff] %v947
  %1077 = vst.msk [vmem:[%s5 + $0x338] sm:$0xff] %vm974, %v948
  %1078 = vst [vmem:[%s5 + $0x340] sm:$0xff] %v949
  %1079 = vst.msk [vmem:[%s5 + $0x348] sm:$0xff] %vm974, %v950
  %1080 = vst [vmem:[%s5 + $0x350] sm:$0xff] %v951
  %1081 = vst.msk [vmem:[%s5 + $0x358] sm:$0xff] %vm974, %v952
  %1082 = vst [vmem:[%s5 + $0x360] sm:$0xff] %v953
  %1083 = vst.msk [vmem:[%s5 + $0x368] sm:$0xff] %vm974, %v954
  %1084 = vst [vmem:[%s5 + $0x370] sm:$0xff] %v955
  %1085 = vst.msk [vmem:[%s5 + $0x378] sm:$0xff] %vm974, %v956
  %1086 = vst [vmem:[%s5 + $0x380] sm:$0xff] %v957
  %1087 = vst.msk [vmem:[%s5 + $0x388] sm:$0xff] %vm974, %v958
  %1088 = vst [vmem:[%s5 + $0x390] sm:$0xff] %v959
  %1089 = vst.msk [vmem:[%s5 + $0x398] sm:$0xff] %vm974, %v960
  %1090 = vst [vmem:[%s5 + $0x3a0] sm:$0xff] %v961
  %1091 = vst.msk [vmem:[%s5 + $0x3a8] sm:$0xff] %vm974, %v962
  %1092 = vst [vmem:[%s5 + $0x3b0] sm:$0xff] %v963
  %1093 = vst.msk [vmem:[%s5 + $0x3b8] sm:$0xff] %vm974, %v964
  %1094 = vst [vmem:[%s5 + $0x3c0] sm:$0xff] %v965
  %1095 = vst.msk [vmem:[%s5 + $0x3c8] sm:$0xff] %vm974, %v966
  %1096 = vst [vmem:[%s5 + $0x3d0] sm:$0xff] %v967
  %1097 = vst.msk [vmem:[%s5 + $0x3d8] sm:$0xff] %vm974, %v968
  %1098 = vst [vmem:[%s5 + $0x3e0] sm:$0xff] %v969
  %1099 = vst.msk [vmem:[%s5 + $0x3e8] sm:$0xff] %vm974, %v970
  %1100 = vst [vmem:[%s5 + $0x3f0] sm:$0xff] %v971
  %1101 = vst.msk [vmem:[%s5 + $0x3f8] sm:$0xff] %vm974, %v972
  // Predicated region
  $region22: #{tpu_custom_call.1} parent=0 // pred_check
    _
  $region23: #{tpu_custom_call.1} parent=0 // pred_check_branch
    %1103 = sbr.rel (0) target = $region25
  $region24: #{tpu_custom_call.1} parent=0 // pred_region
    _
  $region25: #{tpu_custom_call.1} parent=0 // pred_fallthru
    _
  // Predicated region
  $region26: #{tpu_custom_call.1} parent=0 // pred_check
    _
  $region27: #{tpu_custom_call.1} parent=0 // pred_check_branch
    %1105 = sbr.rel (0) target = $region29
  $region28: #{tpu_custom_call.1} parent=0 // pred_region
    _
  $region29: #{tpu_custom_call.1} parent=0 // pred_fallthru
    _

</llo_original>
